<compile_context>
chip_gen: v7x
topology: tpu7x:2x2x1
jax: 0.10.0
libtpu: 0.0.40
codegen_flags: <defaults>
</compile_context>

<pallas_src>
import jax
import jax.numpy as jnp
from jax.experimental import pallas as pl
from jax.experimental.pallas import tpu as pltpu

SIZE = 1  # matches `size = 1` in the PyTorch script

# Double-buffered per-step VMEM budget for (all inputs + output) lane tiles.
_VMEM_BUDGET_BYTES = 8 * 1024 * 1024


def _make_kernel(c1, c2, c3, size):
    c_total = c1 + c2 + c3

    def kernel(x1_ref, x2_ref, x3_ref, o_ref):
        # Refs are (C, tile_hw) — batch dim squeezed by the BlockSpec.
        # v1 = cat([x1, x2, x3]) as three direct channel-slab stores.
        o_ref[0:c1, :] = x1_ref[...]
        o_ref[c1:c1 + c2, :] = x2_ref[...]
        o_ref[c1 + c2:c_total, :] = x3_ref[...]

        # Tail: v1[:, ::2][:, 0:size] appended after v1 (static `size`).
        if size == 1:
            o_ref[c_total:c_total + 1, :] = x1_ref[0:1, :]
        elif 2 * size <= c1:
            # One strided sublane load instead of per-row gather + concat.
            o_ref[c_total:c_total + size, :] = x1_ref[pl.ds(0, size, stride=2), :]
        else:
            # General fallback: even-indexed channels of v1 may come from x2/x3.
            for s in range(size):
                src = 2 * s
                if src < c1:
                    row = x1_ref[src:src + 1, :]
                elif src < c1 + c2:
                    row = x2_ref[src - c1:src - c1 + 1, :]
                else:
                    row = x3_ref[src - c1 - c2:src - c1 - c2 + 1, :]
                o_ref[c_total + s:c_total + s + 1, :] = row

    return kernel


def _tensorcores_per_chip():
    """Best-effort TC-per-chip detection; falls back to 1 (safe)."""
    try:
        kind = str(jax.devices()[0].device_kind).lower()
    except Exception:
        return 1
    if "7" in kind or "v4" in kind or "v5p" in kind:
        return 2
    return 1


def _pick_tile_hw(hw, rows, itemsize, n_batch, n_cores):
    """Lane tile: grow to the full slab within the VMEM budget; on multi-TC
    chips keep B * n_hw >= n_cores so every TensorCore gets a grid step."""
    max_by_vmem = _VMEM_BUDGET_BYTES // (2 * rows * itemsize)
    max_by_vmem = max(128, (max_by_vmem // 128) * 128)

    if hw % 128 != 0:
        # Full-extent block is always legal; only fall back to a 128-multiple
        # tile with a cdiv (masked last block) grid if it would not fit VMEM.
        return hw if hw <= max_by_vmem else max_by_vmem

    tile = min(hw, max_by_vmem)
    n_for_cores = -(-n_cores // max(n_batch, 1))  # ceil(cores / batch)
    if n_for_cores > 1:
        per_core = -(-hw // n_for_cores)           # ceil(hw / n_for_cores)
        per_core = -(-per_core // 128) * 128       # round up to 128-multiple
        tile = min(tile, per_core)
    return max(tile, 128)


def cat_slice_cat(x1, x2, x3, size=SIZE):
    assert x1.ndim == 4 and x2.ndim == 4 and x3.ndim == 4
    B, c1, H, W = x1.shape
    assert x2.shape[0] == B and x2.shape[2:] == (H, W), "batch/spatial mismatch"
    assert x3.shape[0] == B and x3.shape[2:] == (H, W), "batch/spatial mismatch"
    assert x1.dtype == x2.dtype == x3.dtype, "dtype mismatch"
    c2, c3 = x2.shape[1], x3.shape[1]

    c_total = c1 + c2 + c3
    # Mirror torch slicing: v2 has ceil(c_total/2) channels, [0:size] clamps.
    size = min(size, -(-c_total // 2))
    c_out = c_total + size
    hw = H * W

    itemsize = jnp.dtype(x1.dtype).itemsize
    n_cores = _tensorcores_per_chip()
    tile_hw = _pick_tile_hw(hw, c_total + c_out, itemsize, B, n_cores)
    n_hw = pl.cdiv(hw, tile_hw)

    x1r = x1.reshape(B, c1, hw)
    x2r = x2.reshape(B, c2, hw)
    x3r = x3.reshape(B, c3, hw)

    bytes_accessed = (x1r.size + x2r.size + x3r.size + B * c_out * hw) * itemsize

    out = pl.pallas_call(
        _make_kernel(c1, c2, c3, size),
        out_shape=jax.ShapeDtypeStruct((B, c_out, hw), x1.dtype),
        grid=(B, n_hw),
        in_specs=[
            pl.BlockSpec((pl.Squeezed(), c1, tile_hw), lambda b, i: (b, 0, i)),
            pl.BlockSpec((pl.Squeezed(), c2, tile_hw), lambda b, i: (b, 0, i)),
            pl.BlockSpec((pl.Squeezed(), c3, tile_hw), lambda b, i: (b, 0, i)),
        ],
        out_specs=pl.BlockSpec(
            (pl.Squeezed(), c_out, tile_hw), lambda b, i: (b, 0, i)),
        compiler_params=pltpu.CompilerParams(
            dimension_semantics=("parallel", "parallel")),
        cost_estimate=pl.CostEstimate(
            flops=0, transcendentals=0, bytes_accessed=bytes_accessed),
    )(x1r, x2r, x3r)

    return out.reshape(B, c_out, H, W)


def _reference(x1, x2, x3, size=SIZE):
    v1 = jnp.concatenate([x1, x2, x3], axis=1)
    v2 = v1[:, ::2]
    v3 = v2[:, 0:size]
    return jnp.concatenate([v1, v3], axis=1)


if __name__ == "__main__":
    key = jax.random.PRNGKey(0)
    k1, k2, k3, k4, k5, k6 = jax.random.split(key, 6)

    # Spec shapes from the PyTorch module: (1,24,64,64), (1,9,64,64), (1,3,64,64).
    x1 = jax.random.normal(k1, (1, 2 * 3 * 4, 64, 64), dtype=jnp.float32)
    x2 = jax.random.normal(k2, (1, 9, 64, 64), dtype=jnp.float32)
    x3 = jax.random.normal(k3, (1, 3, 64, 64), dtype=jnp.float32)

    out = jax.block_until_ready(cat_slice_cat(x1, x2, x3, size=SIZE))
    ref = _reference(x1, x2, x3, size=SIZE)
    assert out.shape == ref.shape == (1, 37, 64, 64), out.shape
    assert jnp.array_equal(out, ref), "Pallas output mismatch (spec shapes)"

    # Small sanity case: batch=2, H*W not a 128-multiple (full-extent lane
    # block path), size=2 exercises the strided-tail load.
    y1 = jax.random.normal(k4, (2, 6, 10, 20), dtype=jnp.float32)
    y2 = jax.random.normal(k5, (2, 5, 10, 20), dtype=jnp.float32)
    y3 = jax.random.normal(k6, (2, 3, 10, 20), dtype=jnp.float32)
    out2 = jax.block_until_ready(cat_slice_cat(y1, y2, y3, size=2))
    ref2 = _reference(y1, y2, y3, size=2)
    assert out2.shape == ref2.shape == (2, 16, 10, 20), out2.shape
    assert jnp.array_equal(out2, ref2), "Pallas output mismatch (small shapes)"

    print("KERNEL_OK")
</pallas_src>

<mosaic_0001>
module attributes {stable_mosaic.version = 11 : i64} {
  func.func @kernel(%arg0: i32, %arg1: i32, %arg2: memref<1x24x4096xf32, #tpu.memory_space<vmem>>, %arg3: memref<1x9x4096xf32, #tpu.memory_space<vmem>>, %arg4: memref<1x3x4096xf32, #tpu.memory_space<vmem>>, %arg5: memref<1x37x4096xf32, #tpu.memory_space<vmem>>) attributes {dimension_semantics = [#tpu.dimension_semantics<parallel>, #tpu.dimension_semantics<parallel>], iteration_bounds = array<i64: 1, 1>, scalar_prefetch = 0 : i64, scratch_operands = 0 : i64, tpu.core_type = #tpu.core_type<tc>, window_params = [{transform_indices = @transform_0, window_bounds = array<i64: 1, 24, 4096>}, {transform_indices = @transform_1, window_bounds = array<i64: 1, 9, 4096>}, {transform_indices = @transform_2, window_bounds = array<i64: 1, 3, 4096>}, {transform_indices = @transform_3, window_bounds = array<i64: 1, 37, 4096>}]} {
    %c0 = arith.constant 0 : index
    %c0_0 = arith.constant 0 : index
    %c0_1 = arith.constant 0 : index
    %0 = vector.load %arg2[%c0, %c0_0, %c0_1] : memref<1x24x4096xf32, #tpu.memory_space<vmem>>, vector<1x24x4096xf32>
    %1 = vector.shape_cast %0 : vector<1x24x4096xf32> to vector<24x4096xf32>
    %c0_2 = arith.constant 0 : index
    %c0_3 = arith.constant 0 : index
    %c0_4 = arith.constant 0 : index
    %2 = vector.load %arg5[%c0_2, %c0_3, %c0_4] : memref<1x37x4096xf32, #tpu.memory_space<vmem>>, vector<1x24x4096xf32>
    %3 = vector.shape_cast %2 : vector<1x24x4096xf32> to vector<24x4096xf32>
    %4 = vector.shape_cast %1 : vector<24x4096xf32> to vector<1x24x4096xf32>
    tpu.vector_store %arg5[%c0_2, %c0_3, %c0_4], %4 {strides = array<i32>} : memref<1x37x4096xf32, #tpu.memory_space<vmem>>, vector<1x24x4096xf32>,
    %c0_5 = arith.constant 0 : index
    %c0_6 = arith.constant 0 : index
    %c0_7 = arith.constant 0 : index
    %5 = vector.load %arg3[%c0_5, %c0_6, %c0_7] : memref<1x9x4096xf32, #tpu.memory_space<vmem>>, vector<1x9x4096xf32>
    %6 = vector.shape_cast %5 : vector<1x9x4096xf32> to vector<9x4096xf32>
    %c0_8 = arith.constant 0 : index
    %c24 = arith.constant 24 : index
    %c0_9 = arith.constant 0 : index
    %7 = vector.load %arg5[%c0_8, %c24, %c0_9] : memref<1x37x4096xf32, #tpu.memory_space<vmem>>, vector<1x9x4096xf32>
    %8 = vector.shape_cast %7 : vector<1x9x4096xf32> to vector<9x4096xf32>
    %9 = vector.shape_cast %6 : vector<9x4096xf32> to vector<1x9x4096xf32>
    tpu.vector_store %arg5[%c0_8, %c24, %c0_9], %9 {strides = array<i32>} : memref<1x37x4096xf32, #tpu.memory_space<vmem>>, vector<1x9x4096xf32>,
    %c0_10 = arith.constant 0 : index
    %c0_11 = arith.constant 0 : index
    %c0_12 = arith.constant 0 : index
    %10 = vector.load %arg4[%c0_10, %c0_11, %c0_12] : memref<1x3x4096xf32, #tpu.memory_space<vmem>>, vector<1x3x4096xf32>
    %11 = vector.shape_cast %10 : vector<1x3x4096xf32> to vector<3x4096xf32>
    %c0_13 = arith.constant 0 : index
    %c33 = arith.constant 33 : index
    %c0_14 = arith.constant 0 : index
    %12 = vector.load %arg5[%c0_13, %c33, %c0_14] : memref<1x37x4096xf32, #tpu.memory_space<vmem>>, vector<1x3x4096xf32>
    %13 = vector.shape_cast %12 : vector<1x3x4096xf32> to vector<3x4096xf32>
    %14 = vector.shape_cast %11 : vector<3x4096xf32> to vector<1x3x4096xf32>
    tpu.vector_store %arg5[%c0_13, %c33, %c0_14], %14 {strides = array<i32>} : memref<1x37x4096xf32, #tpu.memory_space<vmem>>, vector<1x3x4096xf32>,
    %c0_15 = arith.constant 0 : index
    %c0_16 = arith.constant 0 : index
    %c0_17 = arith.constant 0 : index
    %15 = vector.load %arg2[%c0_15, %c0_16, %c0_17] : memref<1x24x4096xf32, #tpu.memory_space<vmem>>, vector<1x1x4096xf32>
    %16 = vector.shape_cast %15 : vector<1x1x4096xf32> to vector<1x4096xf32>
    %c0_18 = arith.constant 0 : index
    %c36 = arith.constant 36 : index
    %c0_19 = arith.constant 0 : index
    %17 = vector.load %arg5[%c0_18, %c36, %c0_19] : memref<1x37x4096xf32, #tpu.memory_space<vmem>>, vector<1x1x4096xf32>
    %18 = vector.shape_cast %17 : vector<1x1x4096xf32> to vector<1x4096xf32>
    %19 = vector.shape_cast %16 : vector<1x4096xf32> to vector<1x1x4096xf32>
    tpu.vector_store %arg5[%c0_18, %c36, %c0_19], %19 {strides = array<i32>} : memref<1x37x4096xf32, #tpu.memory_space<vmem>>, vector<1x1x4096xf32>,
    return
  }
  func.func @transform_0(%arg0: i32, %arg1: i32) -> (i32, i32, i32) {
    %c0_i32 = arith.constant 0 : i32
    %c0_i32_0 = arith.constant 0 : i32
    return %arg0, %c0_i32, %arg1 : i32, i32, i32
  }
  func.func @transform_1(%arg0: i32, %arg1: i32) -> (i32, i32, i32) {
    %c0_i32 = arith.constant 0 : i32
    %c0_i32_0 = arith.constant 0 : i32
    return %arg0, %c0_i32, %arg1 : i32, i32, i32
  }
  func.func @transform_2(%arg0: i32, %arg1: i32) -> (i32, i32, i32) {
    %c0_i32 = arith.constant 0 : i32
    %c0_i32_0 = arith.constant 0 : i32
    return %arg0, %c0_i32, %arg1 : i32, i32, i32
  }
  func.func @transform_3(%arg0: i32, %arg1: i32) -> (i32, i32, i32) {
    %c0_i32 = arith.constant 0 : i32
    %c0_i32_0 = arith.constant 0 : i32
    return %arg0, %c0_i32, %arg1 : i32, i32, i32
  }
}

</mosaic_0001>

<llo_original>
// kernel: tpu_custom_call.1
$region0: #{tpu_custom_call.1}
  #allocation0 [shape = 'u32[]', space=smem, size = 0x4, offset = 0x4, fixed_abs, tag = 'smem constant byte address 0x4 - core index']
  #allocation1 [shape = 'u32[144,128]{1,0:T(1,128)}', space=vmem, size = 0x12000, scoped, tag = 'internal scratch']
  %s0 = inlined_call_operand.vmem [shape: f32[1,24,4096], index: 0, kind: input, shape index: {}]
  %s1 = inlined_call_operand.vmem [shape: f32[1,9,4096], index: 1, kind: input, shape index: {}]
  %s2 = inlined_call_operand.vmem [shape: f32[1,3,4096], index: 2, kind: input, shape index: {}]
  %s3 = inlined_call_operand.vmem [shape: f32[1,37,4096], index: 3, kind: output, shape index: {}]
  %s4 = sld [smem:[#allocation0]]
  $region22: #{tpu_custom_call.1} parent=0
    _
  %s6 = ssub.s32 1, %s4
  %s7 = scalar_select 0, %s6, %s4
  // Predicated region
  $region2: #{tpu_custom_call.1} parent=0 // pred_check
    _
  $region3: #{tpu_custom_call.1} parent=0 // pred_check_branch
    %9 = sbr.rel (0) target = $region5
  $region4: #{tpu_custom_call.1} parent=0 // pred_region
    _
  $region5: #{tpu_custom_call.1} parent=0 // pred_fallthru
    _
  // Predicated region
  $region6: #{tpu_custom_call.1} parent=0 // pred_check
    _
  $region7: #{tpu_custom_call.1} parent=0 // pred_check_branch
    %11 = sbr.rel (0) target = $region9
  $region8: #{tpu_custom_call.1} parent=0 // pred_region
    _
  $region9: #{tpu_custom_call.1} parent=0 // pred_fallthru
    _
  // Predicated region
  $region10: #{tpu_custom_call.1} parent=0 // pred_check
    _
  $region11: #{tpu_custom_call.1} parent=0 // pred_check_branch
    %13 = sbr.rel (0) target = $region13
  $region12: #{tpu_custom_call.1} parent=0 // pred_region
    _
  $region13: #{tpu_custom_call.1} parent=0 // pred_fallthru
    _
  %v14 = vld [vmem:[%s0] sm:$0xff]
  %v15 = vld [vmem:[%s0 + $0x8] sm:$0xff]
  %v16 = vld [vmem:[%s0 + $0x10] sm:$0xff]
  %v17 = vld [vmem:[%s0 + $0x18] sm:$0xff]
  %v18 = vld [vmem:[%s0 + $0x20] sm:$0xff]
  %v19 = vld [vmem:[%s0 + $0x28] sm:$0xff]
  %v20 = vld [vmem:[%s0 + $0x30] sm:$0xff]
  %v21 = vld [vmem:[%s0 + $0x38] sm:$0xff]
  %v22 = vld [vmem:[%s0 + $0x40] sm:$0xff]
  %v23 = vld [vmem:[%s0 + $0x48] sm:$0xff]
  %v24 = vld [vmem:[%s0 + $0x50] sm:$0xff]
  %v25 = vld [vmem:[%s0 + $0x58] sm:$0xff]
  %v26 = vld [vmem:[%s0 + $0x60] sm:$0xff]
  %v27 = vld [vmem:[%s0 + $0x68] sm:$0xff]
  %v28 = vld [vmem:[%s0 + $0x70] sm:$0xff]
  %v29 = vld [vmem:[%s0 + $0x78] sm:$0xff]
  %v30 = vld [vmem:[%s0 + $0x80] sm:$0xff]
  %v31 = vld [vmem:[%s0 + $0x88] sm:$0xff]
  %v32 = vld [vmem:[%s0 + $0x90] sm:$0xff]
  %v33 = vld [vmem:[%s0 + $0x98] sm:$0xff]
  %v34 = vld [vmem:[%s0 + $0xa0] sm:$0xff]
  %v35 = vld [vmem:[%s0 + $0xa8] sm:$0xff]
  %v36 = vld [vmem:[%s0 + $0xb0] sm:$0xff]
  %v37 = vld [vmem:[%s0 + $0xb8] sm:$0xff]
  %v38 = vld [vmem:[%s0 + $0xc0] sm:$0xff]
  %v39 = vld [vmem:[%s0 + $0xc8] sm:$0xff]
  %v40 = vld [vmem:[%s0 + $0xd0] sm:$0xff]
  %v41 = vld [vmem:[%s0 + $0xd8] sm:$0xff]
  %v42 = vld [vmem:[%s0 + $0xe0] sm:$0xff]
  %v43 = vld [vmem:[%s0 + $0xe8] sm:$0xff]
  %v44 = vld [vmem:[%s0 + $0xf0] sm:$0xff]
  %v45 = vld [vmem:[%s0 + $0xf8] sm:$0xff]
  %v46 = vld [vmem:[%s0 + $0x100] sm:$0xff]
  %v47 = vld [vmem:[%s0 + $0x108] sm:$0xff]
  %v48 = vld [vmem:[%s0 + $0x110] sm:$0xff]
  %v49 = vld [vmem:[%s0 + $0x118] sm:$0xff]
  %v50 = vld [vmem:[%s0 + $0x120] sm:$0xff]
  %v51 = vld [vmem:[%s0 + $0x128] sm:$0xff]
  %v52 = vld [vmem:[%s0 + $0x130] sm:$0xff]
  %v53 = vld [vmem:[%s0 + $0x138] sm:$0xff]
  %v54 = vld [vmem:[%s0 + $0x140] sm:$0xff]
  %v55 = vld [vmem:[%s0 + $0x148] sm:$0xff]
  %v56 = vld [vmem:[%s0 + $0x150] sm:$0xff]
  %v57 = vld [vmem:[%s0 + $0x158] sm:$0xff]
  %v58 = vld [vmem:[%s0 + $0x160] sm:$0xff]
  %v59 = vld [vmem:[%s0 + $0x168] sm:$0xff]
  %v60 = vld [vmem:[%s0 + $0x170] sm:$0xff]
  %v61 = vld [vmem:[%s0 + $0x178] sm:$0xff]
  %v62 = vld [vmem:[%s0 + $0x180] sm:$0xff]
  %v63 = vld [vmem:[%s0 + $0x188] sm:$0xff]
  %v64 = vld [vmem:[%s0 + $0x190] sm:$0xff]
  %v65 = vld [vmem:[%s0 + $0x198] sm:$0xff]
  %v66 = vld [vmem:[%s0 + $0x1a0] sm:$0xff]
  %v67 = vld [vmem:[%s0 + $0x1a8] sm:$0xff]
  %v68 = vld [vmem:[%s0 + $0x1b0] sm:$0xff]
  %v69 = vld [vmem:[%s0 + $0x1b8] sm:$0xff]
  %v70 = vld [vmem:[%s0 + $0x1c0] sm:$0xff]
  %v71 = vld [vmem:[%s0 + $0x1c8] sm:$0xff]
  %v72 = vld [vmem:[%s0 + $0x1d0] sm:$0xff]
  %v73 = vld [vmem:[%s0 + $0x1d8] sm:$0xff]
  %v74 = vld [vmem:[%s0 + $0x1e0] sm:$0xff]
  %v75 = vld [vmem:[%s0 + $0x1e8] sm:$0xff]
  %v76 = vld [vmem:[%s0 + $0x1f0] sm:$0xff]
  %v77 = vld [vmem:[%s0 + $0x1f8] sm:$0xff]
  %v78 = vld [vmem:[%s0 + $0x200] sm:$0xff]
  %v79 = vld [vmem:[%s0 + $0x208] sm:$0xff]
  %v80 = vld [vmem:[%s0 + $0x210] sm:$0xff]
  %v81 = vld [vmem:[%s0 + $0x218] sm:$0xff]
  %v82 = vld [vmem:[%s0 + $0x220] sm:$0xff]
  %v83 = vld [vmem:[%s0 + $0x228] sm:$0xff]
  %v84 = vld [vmem:[%s0 + $0x230] sm:$0xff]
  %v85 = vld [vmem:[%s0 + $0x238] sm:$0xff]
  %v86 = vld [vmem:[%s0 + $0x240] sm:$0xff]
  %v87 = vld [vmem:[%s0 + $0x248] sm:$0xff]
  %v88 = vld [vmem:[%s0 + $0x250] sm:$0xff]
  %v89 = vld [vmem:[%s0 + $0x258] sm:$0xff]
  %v90 = vld [vmem:[%s0 + $0x260] sm:$0xff]
  %v91 = vld [vmem:[%s0 + $0x268] sm:$0xff]
  %v92 = vld [vmem:[%s0 + $0x270] sm:$0xff]
  %v93 = vld [vmem:[%s0 + $0x278] sm:$0xff]
  %v94 = vld [vmem:[%s0 + $0x280] sm:$0xff]
  %v95 = vld [vmem:[%s0 + $0x288] sm:$0xff]
  %v96 = vld [vmem:[%s0 + $0x290] sm:$0xff]
  %v97 = vld [vmem:[%s0 + $0x298] sm:$0xff]
  %v98 = vld [vmem:[%s0 + $0x2a0] sm:$0xff]
  %v99 = vld [vmem:[%s0 + $0x2a8] sm:$0xff]
  %v100 = vld [vmem:[%s0 + $0x2b0] sm:$0xff]
  %v101 = vld [vmem:[%s0 + $0x2b8] sm:$0xff]
  %v102 = vld [vmem:[%s0 + $0x2c0] sm:$0xff]
  %v103 = vld [vmem:[%s0 + $0x2c8] sm:$0xff]
  %v104 = vld [vmem:[%s0 + $0x2d0] sm:$0xff]
  %v105 = vld [vmem:[%s0 + $0x2d8] sm:$0xff]
  %v106 = vld [vmem:[%s0 + $0x2e0] sm:$0xff]
  %v107 = vld [vmem:[%s0 + $0x2e8] sm:$0xff]
  %v108 = vld [vmem:[%s0 + $0x2f0] sm:$0xff]
  %v109 = vld [vmem:[%s0 + $0x2f8] sm:$0xff]
  %110 = vst [vmem:[%s3] sm:$0xff] %v14
  %111 = vst [vmem:[%s3 + $0x8] sm:$0xff] %v15
  %112 = vst [vmem:[%s3 + $0x10] sm:$0xff] %v16
  %113 = vst [vmem:[%s3 + $0x18] sm:$0xff] %v17
  %114 = vst [vmem:[%s3 + $0x20] sm:$0xff] %v18
  %115 = vst [vmem:[%s3 + $0x28] sm:$0xff] %v19
  %116 = vst [vmem:[%s3 + $0x30] sm:$0xff] %v20
  %117 = vst [vmem:[%s3 + $0x38] sm:$0xff] %v21
  %118 = vst [vmem:[%s3 + $0x40] sm:$0xff] %v22
  %119 = vst [vmem:[%s3 + $0x48] sm:$0xff] %v23
  %120 = vst [vmem:[%s3 + $0x50] sm:$0xff] %v24
  %121 = vst [vmem:[%s3 + $0x58] sm:$0xff] %v25
  %122 = vst [vmem:[%s3 + $0x60] sm:$0xff] %v26
  %123 = vst [vmem:[%s3 + $0x68] sm:$0xff] %v27
  %124 = vst [vmem:[%s3 + $0x70] sm:$0xff] %v28
  %125 = vst [vmem:[%s3 + $0x78] sm:$0xff] %v29
  %126 = vst [vmem:[%s3 + $0x80] sm:$0xff] %v30
  %127 = vst [vmem:[%s3 + $0x88] sm:$0xff] %v31
  %128 = vst [vmem:[%s3 + $0x90] sm:$0xff] %v32
  %129 = vst [vmem:[%s3 + $0x98] sm:$0xff] %v33
  %130 = vst [vmem:[%s3 + $0xa0] sm:$0xff] %v34
  %131 = vst [vmem:[%s3 + $0xa8] sm:$0xff] %v35
  %132 = vst [vmem:[%s3 + $0xb0] sm:$0xff] %v36
  %133 = vst [vmem:[%s3 + $0xb8] sm:$0xff] %v37
  %134 = vst [vmem:[%s3 + $0xc0] sm:$0xff] %v38
  %135 = vst [vmem:[%s3 + $0xc8] sm:$0xff] %v39
  %136 = vst [vmem:[%s3 + $0xd0] sm:$0xff] %v40
  %137 = vst [vmem:[%s3 + $0xd8] sm:$0xff] %v41
  %138 = vst [vmem:[%s3 + $0xe0] sm:$0xff] %v42
  %139 = vst [vmem:[%s3 + $0xe8] sm:$0xff] %v43
  %140 = vst [vmem:[%s3 + $0xf0] sm:$0xff] %v44
  %141 = vst [vmem:[%s3 + $0xf8] sm:$0xff] %v45
  %142 = vst [vmem:[%s3 + $0x100] sm:$0xff] %v46
  %143 = vst [vmem:[%s3 + $0x108] sm:$0xff] %v47
  %144 = vst [vmem:[%s3 + $0x110] sm:$0xff] %v48
  %145 = vst [vmem:[%s3 + $0x118] sm:$0xff] %v49
  %146 = vst [vmem:[%s3 + $0x120] sm:$0xff] %v50
  %147 = vst [vmem:[%s3 + $0x128] sm:$0xff] %v51
  %148 = vst [vmem:[%s3 + $0x130] sm:$0xff] %v52
  %149 = vst [vmem:[%s3 + $0x138] sm:$0xff] %v53
  %150 = vst [vmem:[%s3 + $0x140] sm:$0xff] %v54
  %151 = vst [vmem:[%s3 + $0x148] sm:$0xff] %v55
  %152 = vst [vmem:[%s3 + $0x150] sm:$0xff] %v56
  %153 = vst [vmem:[%s3 + $0x158] sm:$0xff] %v57
  %154 = vst [vmem:[%s3 + $0x160] sm:$0xff] %v58
  %155 = vst [vmem:[%s3 + $0x168] sm:$0xff] %v59
  %156 = vst [vmem:[%s3 + $0x170] sm:$0xff] %v60
  %157 = vst [vmem:[%s3 + $0x178] sm:$0xff] %v61
  %158 = vst [vmem:[%s3 + $0x180] sm:$0xff] %v62
  %159 = vst [vmem:[%s3 + $0x188] sm:$0xff] %v63
  %160 = vst [vmem:[%s3 + $0x190] sm:$0xff] %v64
  %161 = vst [vmem:[%s3 + $0x198] sm:$0xff] %v65
  %162 = vst [vmem:[%s3 + $0x1a0] sm:$0xff] %v66
  %163 = vst [vmem:[%s3 + $0x1a8] sm:$0xff] %v67
  %164 = vst [vmem:[%s3 + $0x1b0] sm:$0xff] %v68
  %165 = vst [vmem:[%s3 + $0x1b8] sm:$0xff] %v69
  %166 = vst [vmem:[%s3 + $0x1c0] sm:$0xff] %v70
  %167 = vst [vmem:[%s3 + $0x1c8] sm:$0xff] %v71
  %168 = vst [vmem:[%s3 + $0x1d0] sm:$0xff] %v72
  %169 = vst [vmem:[%s3 + $0x1d8] sm:$0xff] %v73
  %170 = vst [vmem:[%s3 + $0x1e0] sm:$0xff] %v74
  %171 = vst [vmem:[%s3 + $0x1e8] sm:$0xff] %v75
  %172 = vst [vmem:[%s3 + $0x1f0] sm:$0xff] %v76
  %173 = vst [vmem:[%s3 + $0x1f8] sm:$0xff] %v77
  %174 = vst [vmem:[%s3 + $0x200] sm:$0xff] %v78
  %175 = vst [vmem:[%s3 + $0x208] sm:$0xff] %v79
  %176 = vst [vmem:[%s3 + $0x210] sm:$0xff] %v80
  %177 = vst [vmem:[%s3 + $0x218] sm:$0xff] %v81
  %178 = vst [vmem:[%s3 + $0x220] sm:$0xff] %v82
  %179 = vst [vmem:[%s3 + $0x228] sm:$0xff] %v83
  %180 = vst [vmem:[%s3 + $0x230] sm:$0xff] %v84
  %181 = vst [vmem:[%s3 + $0x238] sm:$0xff] %v85
  %182 = vst [vmem:[%s3 + $0x240] sm:$0xff] %v86
  %183 = vst [vmem:[%s3 + $0x248] sm:$0xff] %v87
  %184 = vst [vmem:[%s3 + $0x250] sm:$0xff] %v88
  %185 = vst [vmem:[%s3 + $0x258] sm:$0xff] %v89
  %186 = vst [vmem:[%s3 + $0x260] sm:$0xff] %v90
  %187 = vst [vmem:[%s3 + $0x268] sm:$0xff] %v91
  %188 = vst [vmem:[%s3 + $0x270] sm:$0xff] %v92
  %189 = vst [vmem:[%s3 + $0x278] sm:$0xff] %v93
  %190 = vst [vmem:[%s3 + $0x280] sm:$0xff] %v94
  %191 = vst [vmem:[%s3 + $0x288] sm:$0xff] %v95
  %192 = vst [vmem:[%s3 + $0x290] sm:$0xff] %v96
  %193 = vst [vmem:[%s3 + $0x298] sm:$0xff] %v97
  %194 = vst [vmem:[%s3 + $0x2a0] sm:$0xff] %v98
  %195 = vst [vmem:[%s3 + $0x2a8] sm:$0xff] %v99
  %196 = vst [vmem:[%s3 + $0x2b0] sm:$0xff] %v100
  %197 = vst [vmem:[%s3 + $0x2b8] sm:$0xff] %v101
  %198 = vst [vmem:[%s3 + $0x2c0] sm:$0xff] %v102
  %199 = vst [vmem:[%s3 + $0x2c8] sm:$0xff] %v103
  %200 = vst [vmem:[%s3 + $0x2d0] sm:$0xff] %v104
  %201 = vst [vmem:[%s3 + $0x2d8] sm:$0xff] %v105
  %202 = vst [vmem:[%s3 + $0x2e0] sm:$0xff] %v106
  %203 = vst [vmem:[%s3 + $0x2e8] sm:$0xff] %v107
  %204 = vst [vmem:[%s3 + $0x2f0] sm:$0xff] %v108
  %205 = vst [vmem:[%s3 + $0x2f8] sm:$0xff] %v109
  %v206 = vld [vmem:[%s1] sm:$0xff]
  %v207 = vld [vmem:[%s1 + $0x8] sm:$0xff]
  %v208 = vld [vmem:[%s1 + $0x10] sm:$0xff]
  %v209 = vld [vmem:[%s1 + $0x18] sm:$0xff]
  %v210 = vld [vmem:[%s1 + $0x20] sm:$0xff]
  %v211 = vld [vmem:[%s1 + $0x28] sm:$0xff]
  %v212 = vld [vmem:[%s1 + $0x30] sm:$0xff]
  %v213 = vld [vmem:[%s1 + $0x38] sm:$0xff]
  %v214 = vld [vmem:[%s1 + $0x40] sm:$0xff]
  %v215 = vld [vmem:[%s1 + $0x48] sm:$0xff]
  %v216 = vld [vmem:[%s1 + $0x50] sm:$0xff]
  %v217 = vld [vmem:[%s1 + $0x58] sm:$0xff]
  %v218 = vld [vmem:[%s1 + $0x60] sm:$0xff]
  %v219 = vld [vmem:[%s1 + $0x68] sm:$0xff]
  %v220 = vld [vmem:[%s1 + $0x70] sm:$0xff]
  %v221 = vld [vmem:[%s1 + $0x78] sm:$0xff]
  %v222 = vld [vmem:[%s1 + $0x80] sm:$0xff]
  %v223 = vld [vmem:[%s1 + $0x88] sm:$0xff]
  %v224 = vld [vmem:[%s1 + $0x90] sm:$0xff]
  %v225 = vld [vmem:[%s1 + $0x98] sm:$0xff]
  %v226 = vld [vmem:[%s1 + $0xa0] sm:$0xff]
  %v227 = vld [vmem:[%s1 + $0xa8] sm:$0xff]
  %v228 = vld [vmem:[%s1 + $0xb0] sm:$0xff]
  %v229 = vld [vmem:[%s1 + $0xb8] sm:$0xff]
  %v230 = vld [vmem:[%s1 + $0xc0] sm:$0xff]
  %v231 = vld [vmem:[%s1 + $0xc8] sm:$0xff]
  %v232 = vld [vmem:[%s1 + $0xd0] sm:$0xff]
  %v233 = vld [vmem:[%s1 + $0xd8] sm:$0xff]
  %v234 = vld [vmem:[%s1 + $0xe0] sm:$0xff]
  %v235 = vld [vmem:[%s1 + $0xe8] sm:$0xff]
  %v236 = vld [vmem:[%s1 + $0xf0] sm:$0xff]
  %v237 = vld [vmem:[%s1 + $0xf8] sm:$0xff]
  %v238 = vld [vmem:[%s1 + $0x100] sm:$0x1]
  %v239 = vld [vmem:[%s1 + $0x108] sm:$0x1]
  %v240 = vld [vmem:[%s1 + $0x110] sm:$0x1]
  %v241 = vld [vmem:[%s1 + $0x118] sm:$0x1]
  %v242 = vld [vmem:[%s1 + $0x120] sm:$0x1]
  %v243 = vld [vmem:[%s1 + $0x128] sm:$0x1]
  %v244 = vld [vmem:[%s1 + $0x130] sm:$0x1]
  %v245 = vld [vmem:[%s1 + $0x138] sm:$0x1]
  %v246 = vld [vmem:[%s1 + $0x140] sm:$0x1]
  %v247 = vld [vmem:[%s1 + $0x148] sm:$0x1]
  %v248 = vld [vmem:[%s1 + $0x150] sm:$0x1]
  %v249 = vld [vmem:[%s1 + $0x158] sm:$0x1]
  %v250 = vld [vmem:[%s1 + $0x160] sm:$0x1]
  %v251 = vld [vmem:[%s1 + $0x168] sm:$0x1]
  %v252 = vld [vmem:[%s1 + $0x170] sm:$0x1]
  %v253 = vld [vmem:[%s1 + $0x178] sm:$0x1]
  %v254 = vld [vmem:[%s1 + $0x180] sm:$0x1]
  %v255 = vld [vmem:[%s1 + $0x188] sm:$0x1]
  %v256 = vld [vmem:[%s1 + $0x190] sm:$0x1]
  %v257 = vld [vmem:[%s1 + $0x198] sm:$0x1]
  %v258 = vld [vmem:[%s1 + $0x1a0] sm:$0x1]
  %v259 = vld [vmem:[%s1 + $0x1a8] sm:$0x1]
  %v260 = vld [vmem:[%s1 + $0x1b0] sm:$0x1]
  %v261 = vld [vmem:[%s1 + $0x1b8] sm:$0x1]
  %v262 = vld [vmem:[%s1 + $0x1c0] sm:$0x1]
  %v263 = vld [vmem:[%s1 + $0x1c8] sm:$0x1]
  %v264 = vld [vmem:[%s1 + $0x1d0] sm:$0x1]
  %v265 = vld [vmem:[%s1 + $0x1d8] sm:$0x1]
  %v266 = vld [vmem:[%s1 + $0x1e0] sm:$0x1]
  %v267 = vld [vmem:[%s1 + $0x1e8] sm:$0x1]
  %v268 = vld [vmem:[%s1 + $0x1f0] sm:$0x1]
  %v269 = vld [vmem:[%s1 + $0x1f8] sm:$0x1]
  %270 = vst [vmem:[%s3 + $0x300] sm:$0xff] %v206
  %271 = vst [vmem:[%s3 + $0x308] sm:$0xff] %v207
  %272 = vst [vmem:[%s3 + $0x310] sm:$0xff] %v208
  %273 = vst [vmem:[%s3 + $0x318] sm:$0xff] %v209
  %274 = vst [vmem:[%s3 + $0x320] sm:$0xff] %v210
  %275 = vst [vmem:[%s3 + $0x328] sm:$0xff] %v211
  %276 = vst [vmem:[%s3 + $0x330] sm:$0xff] %v212
  %277 = vst [vmem:[%s3 + $0x338] sm:$0xff] %v213
  %278 = vst [vmem:[%s3 + $0x340] sm:$0xff] %v214
  %279 = vst [vmem:[%s3 + $0x348] sm:$0xff] %v215
  %280 = vst [vmem:[%s3 + $0x350] sm:$0xff] %v216
  %281 = vst [vmem:[%s3 + $0x358] sm:$0xff] %v217
  %282 = vst [vmem:[%s3 + $0x360] sm:$0xff] %v218
  %283 = vst [vmem:[%s3 + $0x368] sm:$0xff] %v219
  %284 = vst [vmem:[%s3 + $0x370] sm:$0xff] %v220
  %285 = vst [vmem:[%s3 + $0x378] sm:$0xff] %v221
  %286 = vst [vmem:[%s3 + $0x380] sm:$0xff] %v222
  %287 = vst [vmem:[%s3 + $0x388] sm:$0xff] %v223
  %288 = vst [vmem:[%s3 + $0x390] sm:$0xff] %v224
  %289 = vst [vmem:[%s3 + $0x398] sm:$0xff] %v225
  %290 = vst [vmem:[%s3 + $0x3a0] sm:$0xff] %v226
  %291 = vst [vmem:[%s3 + $0x3a8] sm:$0xff] %v227
  %292 = vst [vmem:[%s3 + $0x3b0] sm:$0xff] %v228
  %293 = vst [vmem:[%s3 + $0x3b8] sm:$0xff] %v229
  %294 = vst [vmem:[%s3 + $0x3c0] sm:$0xff] %v230
  %295 = vst [vmem:[%s3 + $0x3c8] sm:$0xff] %v231
  %296 = vst [vmem:[%s3 + $0x3d0] sm:$0xff] %v232
  %297 = vst [vmem:[%s3 + $0x3d8] sm:$0xff] %v233
  %298 = vst [vmem:[%s3 + $0x3e0] sm:$0xff] %v234
  %299 = vst [vmem:[%s3 + $0x3e8] sm:$0xff] %v235
  %300 = vst [vmem:[%s3 + $0x3f0] sm:$0xff] %v236
  %301 = vst [vmem:[%s3 + $0x3f8] sm:$0xff] %v237
  %302 = vst [vmem:[%s3 + $0x400] sm:$0x1] %v238
  %303 = vst [vmem:[%s3 + $0x408] sm:$0x1] %v239
  %304 = vst [vmem:[%s3 + $0x410] sm:$0x1] %v240
  %305 = vst [vmem:[%s3 + $0x418] sm:$0x1] %v241
  %306 = vst [vmem:[%s3 + $0x420] sm:$0x1] %v242
  %307 = vst [vmem:[%s3 + $0x428] sm:$0x1] %v243
  %308 = vst [vmem:[%s3 + $0x430] sm:$0x1] %v244
  %309 = vst [vmem:[%s3 + $0x438] sm:$0x1] %v245
  %310 = vst [vmem:[%s3 + $0x440] sm:$0x1] %v246
  %311 = vst [vmem:[%s3 + $0x448] sm:$0x1] %v247
  %312 = vst [vmem:[%s3 + $0x450] sm:$0x1] %v248
  %313 = vst [vmem:[%s3 + $0x458] sm:$0x1] %v249
  %314 = vst [vmem:[%s3 + $0x460] sm:$0x1] %v250
  %315 = vst [vmem:[%s3 + $0x468] sm:$0x1] %v251
  %316 = vst [vmem:[%s3 + $0x470] sm:$0x1] %v252
  %317 = vst [vmem:[%s3 + $0x478] sm:$0x1] %v253
  %318 = vst [vmem:[%s3 + $0x480] sm:$0x1] %v254
  %319 = vst [vmem:[%s3 + $0x488] sm:$0x1] %v255
  %320 = vst [vmem:[%s3 + $0x490] sm:$0x1] %v256
  %321 = vst [vmem:[%s3 + $0x498] sm:$0x1] %v257
  %322 = vst [vmem:[%s3 + $0x4a0] sm:$0x1] %v258
  %323 = vst [vmem:[%s3 + $0x4a8] sm:$0x1] %v259
  %324 = vst [vmem:[%s3 + $0x4b0] sm:$0x1] %v260
  %325 = vst [vmem:[%s3 + $0x4b8] sm:$0x1] %v261
  %326 = vst [vmem:[%s3 + $0x4c0] sm:$0x1] %v262
  %327 = vst [vmem:[%s3 + $0x4c8] sm:$0x1] %v263
  %328 = vst [vmem:[%s3 + $0x4d0] sm:$0x1] %v264
  %329 = vst [vmem:[%s3 + $0x4d8] sm:$0x1] %v265
  %330 = vst [vmem:[%s3 + $0x4e0] sm:$0x1] %v266
  %331 = vst [vmem:[%s3 + $0x4e8] sm:$0x1] %v267
  %332 = vst [vmem:[%s3 + $0x4f0] sm:$0x1] %v268
  %333 = vst [vmem:[%s3 + $0x4f8] sm:$0x1] %v269
  %v334 = vld [vmem:[%s2] sm:$0x77]
  %v335 = vld [vmem:[%s2 + $0x8] sm:$0x77]
  %v336 = vld [vmem:[%s2 + $0x10] sm:$0x77]
  %v337 = vld [vmem:[%s2 + $0x18] sm:$0x77]
  %v338 = vld [vmem:[%s2 + $0x20] sm:$0x77]
  %v339 = vld [vmem:[%s2 + $0x28] sm:$0x77]
  %v340 = vld [vmem:[%s2 + $0x30] sm:$0x77]
  %v341 = vld [vmem:[%s2 + $0x38] sm:$0x77]
  %v342 = vld [vmem:[%s2 + $0x40] sm:$0x77]
  %v343 = vld [vmem:[%s2 + $0x48] sm:$0x77]
  %v344 = vld [vmem:[%s2 + $0x50] sm:$0x77]
  %v345 = vld [vmem:[%s2 + $0x58] sm:$0x77]
  %v346 = vld [vmem:[%s2 + $0x60] sm:$0x77]
  %v347 = vld [vmem:[%s2 + $0x68] sm:$0x77]
  %v348 = vld [vmem:[%s2 + $0x70] sm:$0x77]
  %v349 = vld [vmem:[%s2 + $0x78] sm:$0x77]
  %v366 = vcombine.high %v334, %v334
  %v367 = vcombine.high %v335, %v335
  %v368 = vcombine.high %v336, %v336
  %v369 = vcombine.high %v337, %v337
  %v370 = vcombine.high %v338, %v338
  %v371 = vcombine.high %v339, %v339
  %v372 = vcombine.high %v340, %v340
  %v373 = vcombine.high %v341, %v341
  %v374 = vcombine.high %v342, %v342
  %v375 = vcombine.high %v343, %v343
  %v376 = vcombine.high %v344, %v344
  %v377 = vcombine.high %v345, %v345
  %v378 = vcombine.high %v346, %v346
  %v379 = vcombine.high %v347, %v347
  %v380 = vcombine.high %v348, %v348
  %v381 = vcombine.high %v349, %v349
  %v382 = vrot.slane %v334, 7
  %v383 = vrot.slane %v366, 7
  %v384 = vrot.slane %v335, 7
  %v385 = vrot.slane %v367, 7
  %v386 = vrot.slane %v336, 7
  %v387 = vrot.slane %v368, 7
  %v388 = vrot.slane %v337, 7
  %v389 = vrot.slane %v369, 7
  %v390 = vrot.slane %v338, 7
  %v391 = vrot.slane %v370, 7
  %v392 = vrot.slane %v339, 7
  %v393 = vrot.slane %v371, 7
  %v394 = vrot.slane %v340, 7
  %v395 = vrot.slane %v372, 7
  %v396 = vrot.slane %v341, 7
  %v397 = vrot.slane %v373, 7
  %v398 = vrot.slane %v342, 7
  %v399 = vrot.slane %v374, 7
  %v400 = vrot.slane %v343, 7
  %v401 = vrot.slane %v375, 7
  %v402 = vrot.slane %v344, 7
  %v403 = vrot.slane %v376, 7
  %v404 = vrot.slane %v345, 7
  %v405 = vrot.slane %v377, 7
  %v406 = vrot.slane %v346, 7
  %v407 = vrot.slane %v378, 7
  %v408 = vrot.slane %v347, 7
  %v409 = vrot.slane %v379, 7
  %v410 = vrot.slane %v348, 7
  %v411 = vrot.slane %v380, 7
  %v412 = vrot.slane %v349, 7
  %v413 = vrot.slane %v381, 7
  %446 = vst [vmem:[%s3 + $0x400] sm:$0xe] %v382
  %447 = vst [vmem:[%s3 + $0x408] sm:$0xe] %v383
  %448 = vst [vmem:[%s3 + $0x410] sm:$0xe] %v384
  %449 = vst [vmem:[%s3 + $0x418] sm:$0xe] %v385
  %450 = vst [vmem:[%s3 + $0x420] sm:$0xe] %v386
  %451 = vst [vmem:[%s3 + $0x428] sm:$0xe] %v387
  %452 = vst [vmem:[%s3 + $0x430] sm:$0xe] %v388
  %453 = vst [vmem:[%s3 + $0x438] sm:$0xe] %v389
  %454 = vst [vmem:[%s3 + $0x440] sm:$0xe] %v390
  %455 = vst [vmem:[%s3 + $0x448] sm:$0xe] %v391
  %456 = vst [vmem:[%s3 + $0x450] sm:$0xe] %v392
  %457 = vst [vmem:[%s3 + $0x458] sm:$0xe] %v393
  %458 = vst [vmem:[%s3 + $0x460] sm:$0xe] %v394
  %459 = vst [vmem:[%s3 + $0x468] sm:$0xe] %v395
  %460 = vst [vmem:[%s3 + $0x470] sm:$0xe] %v396
  %461 = vst [vmem:[%s3 + $0x478] sm:$0xe] %v397
  %462 = vst [vmem:[%s3 + $0x480] sm:$0xe] %v398
  %463 = vst [vmem:[%s3 + $0x488] sm:$0xe] %v399
  %464 = vst [vmem:[%s3 + $0x490] sm:$0xe] %v400
  %465 = vst [vmem:[%s3 + $0x498] sm:$0xe] %v401
  %466 = vst [vmem:[%s3 + $0x4a0] sm:$0xe] %v402
  %467 = vst [vmem:[%s3 + $0x4a8] sm:$0xe] %v403
  %468 = vst [vmem:[%s3 + $0x4b0] sm:$0xe] %v404
  %469 = vst [vmem:[%s3 + $0x4b8] sm:$0xe] %v405
  %470 = vst [vmem:[%s3 + $0x4c0] sm:$0xe] %v406
  %471 = vst [vmem:[%s3 + $0x4c8] sm:$0xe] %v407
  %472 = vst [vmem:[%s3 + $0x4d0] sm:$0xe] %v408
  %473 = vst [vmem:[%s3 + $0x4d8] sm:$0xe] %v409
  %474 = vst [vmem:[%s3 + $0x4e0] sm:$0xe] %v410
  %475 = vst [vmem:[%s3 + $0x4e8] sm:$0xe] %v411
  %476 = vst [vmem:[%s3 + $0x4f0] sm:$0xe] %v412
  %477 = vst [vmem:[%s3 + $0x4f8] sm:$0xe] %v413
  %v478 = vld [vmem:[%s0] ss:$8 sm:$0xf]
  %v479 = vld [vmem:[%s0] ss:$8 sm:$0xf0]
  %v480 = vor.u32 %v478, %v479
  %s481 = scalar_lea.vmem %s0, 64
  %v482 = vld [vmem:[%s481] ss:$8 sm:$0xf]
  %v483 = vld [vmem:[%s481] ss:$8 sm:$0xf0]
  %v484 = vor.u32 %v482, %v483
  %s485 = scalar_lea.vmem %s0, 128
  %v486 = vld [vmem:[%s485] ss:$8 sm:$0xf]
  %v487 = vld [vmem:[%s485] ss:$8 sm:$0xf0]
  %v488 = vor.u32 %v486, %v487
  %s489 = scalar_lea.vmem %s0, 192
  %v490 = vld [vmem:[%s489] ss:$8 sm:$0xf]
  %v491 = vld [vmem:[%s489] ss:$8 sm:$0xf0]
  %v492 = vor.u32 %v490, %v491
  %s493 = scalar_lea.vmem %s3, 1028
  %494 = vst [vmem:[%s493] ss:$8 sm:$0xf] %v480
  %495 = vst [vmem:[%s493] ss:$8 sm:$0xf0] %v480
  %s496 = scalar_lea.vmem %s3, 1092
  %497 = vst [vmem:[%s496] ss:$8 sm:$0xf] %v484
  %498 = vst [vmem:[%s496] ss:$8 sm:$0xf0] %v484
  %s499 = scalar_lea.vmem %s3, 1156
  %500 = vst [vmem:[%s499] ss:$8 sm:$0xf] %v488
  %501 = vst [vmem:[%s499] ss:$8 sm:$0xf0] %v488
  %s502 = scalar_lea.vmem %s3, 1220
  %503 = vst [vmem:[%s502] ss:$8 sm:$0xf] %v492
  %504 = vst [vmem:[%s502] ss:$8 sm:$0xf0] %v492
  // Predicated region
  $region14: #{tpu_custom_call.1} parent=0 // pred_check
    _
  $region15: #{tpu_custom_call.1} parent=0 // pred_check_branch
    %506 = sbr.rel (0) target = $region17
  $region16: #{tpu_custom_call.1} parent=0 // pred_region
    _
  $region17: #{tpu_custom_call.1} parent=0 // pred_fallthru
    _
  // Predicated region
  $region18: #{tpu_custom_call.1} parent=0 // pred_check
    _
  $region19: #{tpu_custom_call.1} parent=0 // pred_check_branch
    %508 = sbr.rel (0) target = $region21
  $region20: #{tpu_custom_call.1} parent=0 // pred_region
    _
  $region21: #{tpu_custom_call.1} parent=0 // pred_fallthru
    _

</llo_original>
